<compile_context>
chip_gen: v6e
topology: v6e:2x2x1
jax: 0.10.0
libtpu: 0.0.40
codegen_flags: <defaults>
</compile_context>

<pallas_src>
import jax
import jax.numpy as jnp
from jax.experimental import pallas as pl
from jax.experimental.pallas import tpu as pltpu


# ---------------------------------------------------------------------------
# Kernel
# ---------------------------------------------------------------------------
def _dice_ce_kernel(preds_ref, labels_ref, inter_ref, union_ref, ce_ref, ce_acc):
    """Processes one (B, C, TILE) spatial slab per step of the inner grid axis.

    Outputs are *per-core partial sums* (intersection, union, CE sum); the tiny
    dice/CE normalization + lambda combine is done in plain JAX outside, which
    both removes static kernel params and makes the v7x TensorCore split a
    trivial sum of partials.
    """
    step = pl.program_id(1)

    @pl.when(step == 0)
    def _init():
        inter_ref[...] = jnp.zeros_like(inter_ref)
        union_ref[...] = jnp.zeros_like(union_ref)
        ce_ref[...] = jnp.zeros_like(ce_ref)
        ce_acc[...] = jnp.zeros_like(ce_acc)

    # In-kernel upcast: the HBM streams stay in their native dtype (bf16/f32).
    p = preds_ref[...].astype(jnp.float32)           # (B, C, T)
    t = labels_ref[...].astype(jnp.float32)          # (B, C, T)

    # ---- softmax over the class (sublane) axis; log-softmax never built ----
    m = jnp.max(p, axis=1, keepdims=True)            # (B, 1, T)
    z = p - m
    # TODO(synk): on v6e/v7x a bf16 exp (~2x EUP throughput) is possible once
    # HBM traffic is slimmed, at ~1e-3 accuracy cost; kept exact f32 here.
    e = jnp.exp(z)                                   # (B, C, T)
    s = jnp.sum(e, axis=1, keepdims=True)            # (B, 1, T)
    inv_s = 1.0 / s                                  # B*T divides, not B*C*T
    log_s = jnp.log(s)                               # (B, 1, T)

    # ---- cross-entropy partial (exact soft-target form) --------------------
    #   -sum_c t_c*log_softmax_c = log(s)*sum_c t_c - sum_c t_c*z_c
    # Accumulated lane-wide with pure VPU adds; the single cross-lane reduce
    # happens once per core in _finalize (no per-step scalar dependency chain).
    t_sum = jnp.sum(t, axis=1, keepdims=True)        # (B, 1, T)
    tz_sum = jnp.sum(t * z, axis=1, keepdims=True)   # (B, 1, T)
    ce_acc[...] += log_s * t_sum - tz_sum            # (B, 1, T)

    # ---- dice partial sums over the spatial (lane) axis ---------------------
    soft = e * inv_s                                 # softmax via broadcast mul
    inter_ref[...] += jnp.sum(soft * t, axis=2)      # (B, C)
    union_ref[...] += jnp.sum(soft + t, axis=2)      # (B, C)

    @pl.when(step == pl.num_programs(1) - 1)
    def _finalize():
        ce_ref[...] = jnp.sum(ce_acc[...]).reshape(1, 1)


# ---------------------------------------------------------------------------
# Tiling / device planning
# ---------------------------------------------------------------------------
def _round_up(x, m):
    return (x + m - 1) // m * m


def _device_plan():
    """Generation-aware (tile_budget_bytes, vmem_limit_bytes, num_cores)."""
    vmem_cap = None
    try:
        vmem_cap = int(getattr(pltpu.get_tpu_info(), "vmem_capacity_bytes", 0)) or None
    except Exception:
        vmem_cap = None

    kind = ""
    num_cores = 1
    try:
        dev = jax.devices()[0]
        kind = (getattr(dev, "device_kind", "") or "").lower()
        nc = getattr(dev, "num_cores", None)
        if isinstance(nc, int) and nc > 0:
            num_cores = nc
    except Exception:
        pass

    if vmem_cap is None:
        # v7x-class chips have 64 MiB VMEM per TC; v5e/v6e have 128 MiB.
        vmem_cap = (64 << 20) if "7" in kind else (128 << 20)
    if "7" in kind:                       # v7x: 2 TensorCores per chip
        num_cores = max(num_cores, 2)
    num_cores = max(1, min(num_cores, 2))

    # ~half of VMEM for the tile working set, ~3/4 as the scoped limit.
    budget = max(8 << 20, vmem_cap // 2)
    limit = min(100 << 20, (vmem_cap * 3) // 4)
    return budget, limit, num_cores


def _pick_tile_hw(hw128, b, c, in_bytes_per_elem, budget_bytes):
    """Largest lane-width (multiple of 128, <= padded HW) fitting the budget."""
    candidates = (131072, 65536, 32768, 16384, 8192, 4096,
                  2048, 1024, 512, 256, 128)

    def footprint(t):
        # 2 double-buffered input blocks (native dtype) + ~8 live f32 (B,C,t)
        # intermediates (upcasts, z, e, soft, products) + (B,1,t) f32 CE acc.
        return (2 * b * c * t * in_bytes_per_elem
                + 8 * b * c * t * 4
                + b * t * 4)

    for t in candidates:
        if t <= hw128 and footprint(t) <= budget_bytes:
            return t
    return 128


# ---------------------------------------------------------------------------
# Wrapper
# ---------------------------------------------------------------------------
def dice_ce_loss(preds_nchw, labels_onehot_nchw, *, eps=1e-6,
                 lambda_dice=0.5, lambda_ce=0.5, exclude_background=True):
    B, C, H, W = preds_nchw.shape
    HW = H * W

    # Native-dtype streams (no wrapper f32 cast -> no extra HBM pass);
    # merging H and W is a metadata-only reshape.
    preds3 = preds_nchw.reshape(B, C, HW)
    labels3 = labels_onehot_nchw.reshape(B, C, HW)
    # TODO(synk): for hard integer labels, stream (B, HW) int32 ids and rebuild
    # the one-hot in-kernel (broadcasted_iota == id) to cut label HBM bytes by Cx.

    budget, vmem_limit, num_cores = _device_plan()
    in_bytes = preds3.dtype.itemsize + labels3.dtype.itemsize
    hw128 = _round_up(HW, 128)
    tile = _pick_tile_hw(hw128, B, C, in_bytes, budget)

    total_steps = pl.cdiv(hw128, tile)
    if total_steps < 2:
        num_cores = 1
    steps_per_core = pl.cdiv(total_steps, num_cores)
    hw_pad = steps_per_core * num_cores * tile
    n_pad = hw_pad - HW
    if n_pad:
        # Zero padding: padded pixels add 0 to intersection/CE and exactly 1/C
        # per class to the union "soft" term (corrected analytically below).
        # TODO(synk): an in-kernel masked last tile would avoid this pad pass.
        preds3 = jnp.pad(preds3, ((0, 0), (0, 0), (0, n_pad)))
        labels3 = jnp.pad(labels3, ((0, 0), (0, 0), (0, n_pad)))

    grid_spec = pltpu.PrefetchScalarGridSpec(
        num_scalar_prefetch=0,
        grid=(num_cores, steps_per_core),
        in_specs=[
            pl.BlockSpec((B, C, tile),
                         lambda c, i: (0, 0, c * steps_per_core + i)),
            pl.BlockSpec((B, C, tile),
                         lambda c, i: (0, 0, c * steps_per_core + i)),
        ],
        out_specs=[
            pl.BlockSpec((None, B, C), lambda c, i: (c, 0, 0)),   # inter partial
            pl.BlockSpec((None, B, C), lambda c, i: (c, 0, 0)),   # union partial
            pl.BlockSpec((None, 1, 1), lambda c, i: (c, 0, 0)),   # ce partial
        ],
        scratch_shapes=[
            pltpu.VMEM((B, 1, tile), jnp.float32),   # lane-wide CE accumulator
        ],
    )

    inter_p, union_p, ce_p = pl.pallas_call(
        _dice_ce_kernel,
        out_shape=(
            jax.ShapeDtypeStruct((num_cores, B, C), jnp.float32),
            jax.ShapeDtypeStruct((num_cores, B, C), jnp.float32),
            jax.ShapeDtypeStruct((num_cores, 1, 1), jnp.float32),
        ),
        grid_spec=grid_spec,
        compiler_params=pltpu.CompilerParams(
            dimension_semantics=("parallel", "arbitrary"),
            vmem_limit_bytes=vmem_limit,
        ),
    )(preds3, labels3)

    # ---- tiny finalize in plain JAX (combines per-core partials) -----------
    inter = jnp.sum(inter_p, axis=0)                 # (B, C)
    union = jnp.sum(union_p, axis=0)                 # (B, C)
    if n_pad:
        union = union - (n_pad / C)                  # remove padded softmax mass
    ce = jnp.sum(ce_p) / (B * HW)

    dice_coeff = (2.0 * inter + eps) / (union + eps)
    start = 1 if exclude_background else 0
    denom = max(C - start, 1)                        # guard C==1 div-by-zero
    dice_loss = jnp.sum(1.0 - dice_coeff[:, start:]) / (denom * B)
    return lambda_dice * dice_loss + lambda_ce * ce


# ---------------------------------------------------------------------------
# Pure-JAX reference mirroring the PyTorch forward (4D one-hot labels)
# ---------------------------------------------------------------------------
def dice_ce_loss_ref(preds, labels_onehot, *, eps=1e-6,
                     lambda_dice=0.5, lambda_ce=0.5, exclude_background=True):
    preds = preds.astype(jnp.float32)
    labels_onehot = labels_onehot.astype(jnp.float32)
    soft = jax.nn.softmax(preds, axis=1)
    logsm = jax.nn.log_softmax(preds, axis=1)
    ce = -jnp.mean(jnp.sum(labels_onehot * logsm, axis=1))

    C = preds.shape[1]
    start = 1 if exclude_background else 0
    dice_loss = 0.0
    for cls in range(start, C):
        pred_cls = soft[:, cls, :, :]
        true_cls = labels_onehot[:, cls, :, :]
        inter = jnp.sum(pred_cls * true_cls, axis=(1, 2))
        union = jnp.sum(pred_cls, axis=(1, 2)) + jnp.sum(true_cls, axis=(1, 2))
        dice_loss = dice_loss + (1.0 - (2.0 * inter + eps) / (union + eps))
    dice_loss = dice_loss / (C - 1 if exclude_background else C)
    return lambda_dice * jnp.mean(dice_loss) + lambda_ce * ce


if __name__ == "__main__":
    B, C, H, W = 2, 4, 16, 16
    key = jax.random.PRNGKey(0)
    k_pred, k_lab = jax.random.split(key)

    preds = jax.random.normal(k_pred, (B, C, H, W), dtype=jnp.float32)
    label_ids = jax.random.randint(k_lab, (B, H, W), 0, C)
    # Module's intended 4D path: one-hot float labels, NCHW.
    labels_onehot = jnp.transpose(
        jax.nn.one_hot(label_ids, C, dtype=jnp.float32), (0, 3, 1, 2))

    loss = dice_ce_loss(preds, labels_onehot)
    loss = jax.block_until_ready(loss)

    ref = dice_ce_loss_ref(preds, labels_onehot)
    assert jnp.allclose(loss, ref, rtol=1e-5, atol=1e-5), (loss, ref)
    print("KERNEL_OK")
</pallas_src>

<mosaic_0001>
module attributes {stable_mosaic.version = 11 : i64} {
  func.func @_dice_ce_kernel(%arg0: i32, %arg1: i32, %arg2: memref<2x4x256xf32, #tpu.memory_space<vmem>>, %arg3: memref<2x4x256xf32, #tpu.memory_space<vmem>>, %arg4: memref<1x2x4xf32, #tpu.memory_space<vmem>>, %arg5: memref<1x2x4xf32, #tpu.memory_space<vmem>>, %arg6: memref<1x1x1xf32, #tpu.memory_space<vmem>>, %arg7: memref<2x1x256xf32, #tpu.memory_space<vmem>>) attributes {dimension_semantics = [#tpu.dimension_semantics<parallel>, #tpu.dimension_semantics<arbitrary>], iteration_bounds = array<i64: 1, 1>, scalar_prefetch = 0 : i64, scratch_operands = 1 : i64, tpu.core_type = #tpu.core_type<tc>, window_params = [{transform_indices = @transform_0, window_bounds = array<i64: 2, 4, 256>}, {transform_indices = @transform_1, window_bounds = array<i64: 2, 4, 256>}, {transform_indices = @transform_2, window_bounds = array<i64: 1, 2, 4>}, {transform_indices = @transform_3, window_bounds = array<i64: 1, 2, 4>}, {transform_indices = @transform_4, window_bounds = array<i64: 1, 1, 1>}]} {
    %c0_i32 = arith.constant 0 : i32
    %0 = arith.cmpi eq, %arg1, %c0_i32 : i32
    %1 = arith.extui %0 : i1 to i32
    %c0_i32_0 = arith.constant 0 : i32
    %2 = arith.cmpi ne, %1, %c0_i32_0 : i32
    scf.if %2 {
      %cst_32 = arith.constant 0.000000e+00 : f32
      %46 = vector.broadcast %cst_32 : f32 to vector<2x4xf32>
      %c0_33 = arith.constant 0 : index
      %c0_34 = arith.constant 0 : index
      %c0_35 = arith.constant 0 : index
      %47 = vector.load %arg4[%c0_33, %c0_34, %c0_35] : memref<1x2x4xf32, #tpu.memory_space<vmem>>, vector<1x2x4xf32>
      %48 = vector.shape_cast %47 : vector<1x2x4xf32> to vector<2x4xf32>
      %49 = vector.shape_cast %46 : vector<2x4xf32> to vector<1x2x4xf32>
      tpu.vector_store %arg4[%c0_33, %c0_34, %c0_35], %49 {strides = array<i32>} : memref<1x2x4xf32, #tpu.memory_space<vmem>>, vector<1x2x4xf32>,
      %cst_36 = arith.constant 0.000000e+00 : f32
      %50 = vector.broadcast %cst_36 : f32 to vector<2x4xf32>
      %c0_37 = arith.constant 0 : index
      %c0_38 = arith.constant 0 : index
      %c0_39 = arith.constant 0 : index
      %51 = vector.load %arg5[%c0_37, %c0_38, %c0_39] : memref<1x2x4xf32, #tpu.memory_space<vmem>>, vector<1x2x4xf32>
      %52 = vector.shape_cast %51 : vector<1x2x4xf32> to vector<2x4xf32>
      %53 = vector.shape_cast %50 : vector<2x4xf32> to vector<1x2x4xf32>
      tpu.vector_store %arg5[%c0_37, %c0_38, %c0_39], %53 {strides = array<i32>} : memref<1x2x4xf32, #tpu.memory_space<vmem>>, vector<1x2x4xf32>,
      %cst_40 = arith.constant 0.000000e+00 : f32
      %54 = vector.broadcast %cst_40 : f32 to vector<1x1xf32>
      %c0_41 = arith.constant 0 : index
      %c0_42 = arith.constant 0 : index
      %c0_43 = arith.constant 0 : index
      %55 = vector.load %arg6[%c0_41, %c0_42, %c0_43] : memref<1x1x1xf32, #tpu.memory_space<vmem>>, vector<1x1x1xf32>
      %56 = vector.shape_cast %55 : vector<1x1x1xf32> to vector<1x1xf32>
      %57 = vector.shape_cast %54 : vector<1x1xf32> to vector<1x1x1xf32>
      tpu.vector_store %arg6[%c0_41, %c0_42, %c0_43], %57 {strides = array<i32>} : memref<1x1x1xf32, #tpu.memory_space<vmem>>, vector<1x1x1xf32>,
      %cst_44 = arith.constant 0.000000e+00 : f32
      %58 = vector.broadcast %cst_44 : f32 to vector<2x1x256xf32>
      %c0_45 = arith.constant 0 : index
      %c0_46 = arith.constant 0 : index
      %c0_47 = arith.constant 0 : index
      %59 = vector.load %arg7[%c0_45, %c0_46, %c0_47] : memref<2x1x256xf32, #tpu.memory_space<vmem>>, vector<2x1x256xf32>
      tpu.vector_store %arg7[%c0_45, %c0_46, %c0_47], %58 {strides = array<i32>} : memref<2x1x256xf32, #tpu.memory_space<vmem>>, vector<2x1x256xf32>,
    } else {
    }
    %c0 = arith.constant 0 : index
    %c0_1 = arith.constant 0 : index
    %c0_2 = arith.constant 0 : index
    %3 = vector.load %arg2[%c0, %c0_1, %c0_2] : memref<2x4x256xf32, #tpu.memory_space<vmem>>, vector<2x4x256xf32>
    %c0_3 = arith.constant 0 : index
    %c0_4 = arith.constant 0 : index
    %c0_5 = arith.constant 0 : index
    %4 = vector.load %arg3[%c0_3, %c0_4, %c0_5] : memref<2x4x256xf32, #tpu.memory_space<vmem>>, vector<2x4x256xf32>
    %cst = arith.constant dense<0xFF800000> : vector<2x256xf32>
    %5 = vector.multi_reduction <maximumf>, %3, %cst [1] : vector<2x4x256xf32> to vector<2x256xf32>
    %6 = vector.shape_cast %5 : vector<2x256xf32> to vector<2x1x256xf32>
    %7 = vector.broadcast %6 : vector<2x1x256xf32> to vector<2x4x256xf32>
    %8 = arith.subf %3, %7 : vector<2x4x256xf32>
    %9 = math.exp %8 : vector<2x4x256xf32>
    %cst_6 = arith.constant dense<0.000000e+00> : vector<2x256xf32>
    %10 = vector.multi_reduction <add>, %9, %cst_6 [1] : vector<2x4x256xf32> to vector<2x256xf32>
    %11 = vector.shape_cast %10 : vector<2x256xf32> to vector<2x1x256xf32>
    %cst_7 = arith.constant 1.000000e+00 : f32
    %12 = vector.broadcast %cst_7 : f32 to vector<2x1x256xf32>
    %13 = arith.divf %12, %11 : vector<2x1x256xf32>
    %14 = math.log %11 : vector<2x1x256xf32>
    %cst_8 = arith.constant dense<0.000000e+00> : vector<2x256xf32>
    %15 = vector.multi_reduction <add>, %4, %cst_8 [1] : vector<2x4x256xf32> to vector<2x256xf32>
    %16 = vector.shape_cast %15 : vector<2x256xf32> to vector<2x1x256xf32>
    %17 = arith.mulf %4, %8 : vector<2x4x256xf32>
    %cst_9 = arith.constant dense<0.000000e+00> : vector<2x256xf32>
    %18 = vector.multi_reduction <add>, %17, %cst_9 [1] : vector<2x4x256xf32> to vector<2x256xf32>
    %19 = vector.shape_cast %18 : vector<2x256xf32> to vector<2x1x256xf32>
    %c0_10 = arith.constant 0 : index
    %c0_11 = arith.constant 0 : index
    %c0_12 = arith.constant 0 : index
    %20 = vector.load %arg7[%c0_10, %c0_11, %c0_12] : memref<2x1x256xf32, #tpu.memory_space<vmem>>, vector<2x1x256xf32>
    %21 = arith.mulf %14, %16 : vector<2x1x256xf32>
    %22 = arith.subf %21, %19 : vector<2x1x256xf32>
    %23 = arith.addf %20, %22 : vector<2x1x256xf32>
    %c0_13 = arith.constant 0 : index
    %c0_14 = arith.constant 0 : index
    %c0_15 = arith.constant 0 : index
    %24 = vector.load %arg7[%c0_13, %c0_14, %c0_15] : memref<2x1x256xf32, #tpu.memory_space<vmem>>, vector<2x1x256xf32>
    tpu.vector_store %arg7[%c0_13, %c0_14, %c0_15], %23 {strides = array<i32>} : memref<2x1x256xf32, #tpu.memory_space<vmem>>, vector<2x1x256xf32>,
    %25 = vector.broadcast %13 : vector<2x1x256xf32> to vector<2x4x256xf32>
    %26 = arith.mulf %9, %25 : vector<2x4x256xf32>
    %c0_16 = arith.constant 0 : index
    %c0_17 = arith.constant 0 : index
    %c0_18 = arith.constant 0 : index
    %27 = vector.load %arg4[%c0_16, %c0_17, %c0_18] : memref<1x2x4xf32, #tpu.memory_space<vmem>>, vector<1x2x4xf32>
    %28 = vector.shape_cast %27 : vector<1x2x4xf32> to vector<2x4xf32>
    %29 = arith.mulf %26, %4 : vector<2x4x256xf32>
    %cst_19 = arith.constant dense<0.000000e+00> : vector<2x4xf32>
    %30 = vector.multi_reduction <add>, %29, %cst_19 [2] : vector<2x4x256xf32> to vector<2x4xf32>
    %31 = arith.addf %28, %30 : vector<2x4xf32>
    %c0_20 = arith.constant 0 : index
    %c0_21 = arith.constant 0 : index
    %c0_22 = arith.constant 0 : index
    %32 = vector.load %arg4[%c0_20, %c0_21, %c0_22] : memref<1x2x4xf32, #tpu.memory_space<vmem>>, vector<1x2x4xf32>
    %33 = vector.shape_cast %32 : vector<1x2x4xf32> to vector<2x4xf32>
    %34 = vector.shape_cast %31 : vector<2x4xf32> to vector<1x2x4xf32>
    tpu.vector_store %arg4[%c0_20, %c0_21, %c0_22], %34 {strides = array<i32>} : memref<1x2x4xf32, #tpu.memory_space<vmem>>, vector<1x2x4xf32>,
    %c0_23 = arith.constant 0 : index
    %c0_24 = arith.constant 0 : index
    %c0_25 = arith.constant 0 : index
    %35 = vector.load %arg5[%c0_23, %c0_24, %c0_25] : memref<1x2x4xf32, #tpu.memory_space<vmem>>, vector<1x2x4xf32>
    %36 = vector.shape_cast %35 : vector<1x2x4xf32> to vector<2x4xf32>
    %37 = arith.addf %26, %4 : vector<2x4x256xf32>
    %cst_26 = arith.constant dense<0.000000e+00> : vector<2x4xf32>
    %38 = vector.multi_reduction <add>, %37, %cst_26 [2] : vector<2x4x256xf32> to vector<2x4xf32>
    %39 = arith.addf %36, %38 : vector<2x4xf32>
    %c0_27 = arith.constant 0 : index
    %c0_28 = arith.constant 0 : index
    %c0_29 = arith.constant 0 : index
    %40 = vector.load %arg5[%c0_27, %c0_28, %c0_29] : memref<1x2x4xf32, #tpu.memory_space<vmem>>, vector<1x2x4xf32>
    %41 = vector.shape_cast %40 : vector<1x2x4xf32> to vector<2x4xf32>
    %42 = vector.shape_cast %39 : vector<2x4xf32> to vector<1x2x4xf32>
    tpu.vector_store %arg5[%c0_27, %c0_28, %c0_29], %42 {strides = array<i32>} : memref<1x2x4xf32, #tpu.memory_space<vmem>>, vector<1x2x4xf32>,
    %c0_i32_30 = arith.constant 0 : i32
    %43 = arith.cmpi eq, %arg1, %c0_i32_30 : i32
    %44 = arith.extui %43 : i1 to i32
    %c0_i32_31 = arith.constant 0 : i32
    %45 = arith.cmpi ne, %44, %c0_i32_31 : i32
    scf.if %45 {
      %c0_32 = arith.constant 0 : index
      %c0_33 = arith.constant 0 : index
      %c0_34 = arith.constant 0 : index
      %46 = vector.load %arg7[%c0_32, %c0_33, %c0_34] : memref<2x1x256xf32, #tpu.memory_space<vmem>>, vector<2x1x256xf32>
      %47 = vector.shape_cast %46 : vector<2x1x256xf32> to vector<1x2x1x256xf32>
      %cst_35 = arith.constant dense<0.000000e+00> : vector<1xf32>
      %48 = vector.multi_reduction <add>, %47, %cst_35 [1, 2, 3] : vector<1x2x1x256xf32> to vector<1xf32>
      %49 = vector.shape_cast %48 : vector<1xf32> to vector<1x1x1x1xf32>
      %50 = vector.extract %49[0, 0, 0, 0] : f32 from vector<1x1x1x1xf32>
      %51 = vector.broadcast %50 : f32 to vector<1x1xf32>
      %c0_36 = arith.constant 0 : index
      %c0_37 = arith.constant 0 : index
      %c0_38 = arith.constant 0 : index
      %52 = vector.load %arg6[%c0_36, %c0_37, %c0_38] : memref<1x1x1xf32, #tpu.memory_space<vmem>>, vector<1x1x1xf32>
      %53 = vector.shape_cast %52 : vector<1x1x1xf32> to vector<1x1xf32>
      %54 = vector.shape_cast %51 : vector<1x1xf32> to vector<1x1x1xf32>
      tpu.vector_store %arg6[%c0_36, %c0_37, %c0_38], %54 {strides = array<i32>} : memref<1x1x1xf32, #tpu.memory_space<vmem>>, vector<1x1x1xf32>,
    } else {
    }
    return
  }
  func.func @transform_0(%arg0: i32, %arg1: i32) -> (i32, i32, i32) {
    %c1_i32 = arith.constant 1 : i32
    %0 = arith.muli %arg0, %c1_i32 : i32
    %1 = arith.addi %0, %arg1 : i32
    %c0_i32 = arith.constant 0 : i32
    %c0_i32_0 = arith.constant 0 : i32
    %c0_i32_1 = arith.constant 0 : i32
    return %c0_i32, %c0_i32_0, %1 : i32, i32, i32
  }
  func.func @transform_1(%arg0: i32, %arg1: i32) -> (i32, i32, i32) {
    %c1_i32 = arith.constant 1 : i32
    %0 = arith.muli %arg0, %c1_i32 : i32
    %1 = arith.addi %0, %arg1 : i32
    %c0_i32 = arith.constant 0 : i32
    %c0_i32_0 = arith.constant 0 : i32
    %c0_i32_1 = arith.constant 0 : i32
    return %c0_i32, %c0_i32_0, %1 : i32, i32, i32
  }
  func.func @transform_2(%arg0: i32, %arg1: i32) -> (i32, i32, i32) {
    %c0_i32 = arith.constant 0 : i32
    %c0_i32_0 = arith.constant 0 : i32
    %c0_i32_1 = arith.constant 0 : i32
    return %arg0, %c0_i32, %c0_i32_0 : i32, i32, i32
  }
  func.func @transform_3(%arg0: i32, %arg1: i32) -> (i32, i32, i32) {
    %c0_i32 = arith.constant 0 : i32
    %c0_i32_0 = arith.constant 0 : i32
    %c0_i32_1 = arith.constant 0 : i32
    return %arg0, %c0_i32, %c0_i32_0 : i32, i32, i32
  }
  func.func @transform_4(%arg0: i32, %arg1: i32) -> (i32, i32, i32) {
    %c0_i32 = arith.constant 0 : i32
    %c0_i32_0 = arith.constant 0 : i32
    %c0_i32_1 = arith.constant 0 : i32
    return %arg0, %c0_i32, %c0_i32_0 : i32, i32, i32
  }
}

</mosaic_0001>

<llo_original>
// kernel: tpu_custom_call.1
$region0: #{tpu_custom_call.1}
  #allocation0 [shape = 'u32[]', space=smem, size = 0x4, offset = 0x4, fixed_abs, tag = 'smem constant byte address 0x4 - core index']
  #allocation1 [shape = 'u32[144,128]{1,0:T(1,128)}', space=vmem, size = 0x12000, scoped, tag = 'internal scratch']
  #allocation2 [shape = 'f32[2,1,256]{2,1,0:T(1,128)}', space=vmem, size = 0x800, scoped, tag = 'scratch operand']
  %s0 = inlined_call_operand.hbm [shape: f32[2,4,256], index: 0, kind: input, shape index: {}]
  %s1 = inlined_call_operand.hbm [shape: f32[2,4,256], index: 1, kind: input, shape index: {}]
  %s2 = inlined_call_operand.hbm [shape: f32[1,2,4], index: 2, kind: output, shape index: {0}]
  %s3 = inlined_call_operand.hbm [shape: f32[1,2,4], index: 3, kind: output, shape index: {1}]
  %s4 = inlined_call_operand.hbm [shape: f32[1,1,1], index: 4, kind: output, shape index: {2}]
  %5 = xla_tuple %s2, %s3, %s4
  %s6 = sld [smem:[#allocation0]]
  $region50: #{tpu_custom_call.1} parent=0
    _
  %s8 = ssub.s32 1, %s6
  %s9 = scalar_select 0, %s8, %s6
  $region1: #{tpu_custom_call.1} parent=0
    #allocation3 [shape = 'u8[8192]{0}', space=vmem, size = 0x2000, scoped, tag = 'input window, operand 0, single buffered']
    #allocation4 [shape = 's32[1]{0}', space=sflag, size = 0x4, scoped, tag = 'scoped memory for tpu_custom_call.1']
    #allocation5 [shape = 's32[1]{0}', space=sflag, size = 0x4, scoped, tag = 'scoped memory for tpu_custom_call.1']
    #allocation6 [shape = 'u8[8192]{0}', space=vmem, size = 0x2000, scoped, tag = 'input window, operand 1, single buffered']
    #allocation7 [shape = 's32[1]{0}', space=sflag, size = 0x4, scoped, tag = 'scoped memory for tpu_custom_call.1']
    #allocation8 [shape = 'u8[1024]{0}', space=vmem, size = 0x400, scoped, tag = 'output window, operand 0, single buffered']
    #allocation9 [shape = 'u8[1024]{0}', space=vmem, size = 0x400, scoped, tag = 'output window, operand 1, single buffered']
    #allocation10 [shape = 's32[1]{0}', space=sflag, size = 0x4, scoped, tag = 'scoped memory for tpu_custom_call.1']
    #allocation11 [shape = 'u8[512]{0}', space=vmem, size = 0x400, scoped, tag = 'output window, operand 2, single buffered']
    %10 = vsyncpa [#allocation4], 0
    %11 = vsyncpa [#allocation7], 0
    %12 = vsyncpa [#allocation5], 0
    %13 = vsyncpa [#allocation10], 0
    // Predicated region
    $region2: #{tpu_custom_call.1} parent=1 // pred_check
      _
    $region3: #{tpu_custom_call.1} parent=1 // pred_check_branch
      %15 = sbr.rel (0) target = $region5
    $region4: #{tpu_custom_call.1} parent=1 // pred_region
      %s16 = sadd.s32 0, 0
      %s17 = smul.u32 2, %s16
      %s19 = ssub.s32 256, 256
      %20 = vsyncadd [#allocation4], %s19
      %s21 = smul.addr %s17, 64
      %s22 = scalar_lea.hbm %s0, %s21
      %s23 = sshll.u32 [#allocation3], 4
      %s24 = int_to_ptr.vmem [resolvable:$true] %s23
      %29 = dma.hbm_to_vmem [thread:$0]  %s22, 256, %s24, [#allocation4], 128, 128, 8
    $region5: #{tpu_custom_call.1} parent=1 // pred_fallthru
      _
    // Predicated region
    $region6: #{tpu_custom_call.1} parent=1 // pred_check
      _
    $region7: #{tpu_custom_call.1} parent=1 // pred_check_branch
      %31 = sbr.rel (0) target = $region9
    $region8: #{tpu_custom_call.1} parent=1 // pred_region
      %s32 = sadd.s32 0, 0
      %s33 = smul.u32 2, %s32
      %s35 = ssub.s32 256, 256
      %36 = vsyncadd [#allocation7], %s35
      %s37 = smul.addr %s33, 64
      %s38 = scalar_lea.hbm %s1, %s37
      %s39 = sshll.u32 [#allocation6], 4
      %s40 = int_to_ptr.vmem [resolvable:$true] %s39
      %45 = dma.hbm_to_vmem [thread:$0]  %s38, 256, %s40, [#allocation7], 128, 128, 8
    $region9: #{tpu_custom_call.1} parent=1 // pred_fallthru
      _
    // Predicated region
    $region10: #{tpu_custom_call.1} parent=1 // pred_check
      _
    $region11: #{tpu_custom_call.1} parent=1 // pred_check_branch
      %47 = sbr.rel (0) target = $region13
    $region12: #{tpu_custom_call.1} parent=1 // pred_region
      %48 = dma.done [#allocation4], 256
    $region13: #{tpu_custom_call.1} parent=1 // pred_fallthru
      _
    // Predicated region
    $region14: #{tpu_custom_call.1} parent=1 // pred_check
      _
    $region15: #{tpu_custom_call.1} parent=1 // pred_check_branch
      %50 = sbr.rel (0) target = $region17
    $region16: #{tpu_custom_call.1} parent=1 // pred_region
      %51 = dma.done [#allocation7], 256
    $region17: #{tpu_custom_call.1} parent=1 // pred_fallthru
      _
    %s52 = sadd.s32 0, 0
    %s53 = smul.u32 2, %s52
    %s54 = sadd.s32 0, 0
    %s55 = smul.u32 2, %s54
    %p56 = scmp.eq.s32.totalorder 0, 0
    // Predicated region
    $region18: #{tpu_custom_call.1} parent=1 // pred_check
      %p57 = pneg %p56
    $region19: #{tpu_custom_call.1} parent=1 // pred_check_branch
      %59 = sbr.rel (%p57) target = $region21
    $region20: #{tpu_custom_call.1} parent=1 // pred_region
      %vm60 = vcmask 25600
      %61 = vst.msk [vmem:[#allocation8] sm:$0x3] %vm60, 0.0
      %62 = vst.msk [vmem:[#allocation9] sm:$0x3] %vm60, 0.0
      %vm63 = vcmask 0
      %64 = vst.msk [vmem:[#allocation11] sm:$0x1] %vm63, 0.0
      %v65 = vlaneseq
      %vm66 = vcmp.ge.s32.totalorder %v65, 0
      %vm67 = vcmp.lt.s32.totalorder %v65, 256
      %vm68 = vmand %vm66, %vm67
      %69 = vst.msk [vmem:[#allocation2] sm:$0x3] %vm68, 0.0
      %70 = vst.msk [vmem:[#allocation2 + $0x2] sm:$0x3] %vm68, 0.0
    $region21: #{tpu_custom_call.1} parent=1 // pred_fallthru
      _
    %v71 = vld [vmem:[#allocation3] sm:$0xff]
    %v72 = vld [vmem:[#allocation3 + $0x8] sm:$0xff]
    %v73 = vld [vmem:[#allocation6] sm:$0xff]
    %v74 = vld [vmem:[#allocation6 + $0x8] sm:$0xff]
    %v77 = vcombine.high %v71, %v71
    %v78 = vcombine.high %v72, %v72
    %vm81 = vcmask 1043456
    %v82 = vsel %vm81, %v71, -inf
    %v83 = vrot.slane %v82, 4
    %v84 = vmax.f32 %v82, %v83
    %v85 = vrot.slane %v84, 2
    %v86 = vmax.f32 %v84, %v85
    %v87 = vrot.slane %v86, 1
    %v88 = vmax.f32 %v86, %v87
    %v89 = vsel %vm81, %v77, -inf
    %v90 = vrot.slane %v89, 4
    %v91 = vmax.f32 %v89, %v90
    %v92 = vrot.slane %v91, 2
    %v93 = vmax.f32 %v91, %v92
    %v94 = vrot.slane %v93, 1
    %v95 = vmax.f32 %v93, %v94
    %v96 = vsel %vm81, %v72, -inf
    %v97 = vrot.slane %v96, 4
    %v98 = vmax.f32 %v96, %v97
    %v99 = vrot.slane %v98, 2
    %v100 = vmax.f32 %v98, %v99
    %v101 = vrot.slane %v100, 1
    %v102 = vmax.f32 %v100, %v101
    %v103 = vsel %vm81, %v78, -inf
    %v104 = vrot.slane %v103, 4
    %v105 = vmax.f32 %v103, %v104
    %v106 = vrot.slane %v105, 2
    %v107 = vmax.f32 %v105, %v106
    %v108 = vrot.slane %v107, 1
    %v109 = vmax.f32 %v107, %v108
    %v114 = vcombine.low %v88, %v95
    %v115 = vcombine.low %v102, %v109
    %v118 = vsub.f32 %v71, %v114
    %v119 = vsub.f32 %v72, %v115
    %v120 = vmul.f32 %v118, 1.442695
    %v121 = vpow.pop %v120
    %v122 = vmul.f32 %v119, 1.442695
    %v123 = vpow.pop %v122
    %v126 = vcombine.high %v121, %v121
    %v127 = vcombine.high %v123, %v123
    %v130 = vsel %vm81, %v121, 0.0
    %v131 = vrot.slane %v130, 4
    %v132 = vadd.f32 %v130, %v131
    %v133 = vrot.slane %v132, 2
    %v134 = vadd.f32 %v132, %v133
    %v135 = vrot.slane %v134, 1
    %v136 = vadd.f32 %v134, %v135
    %v137 = vsel %vm81, %v126, 0.0
    %v138 = vrot.slane %v137, 4
    %v139 = vadd.f32 %v137, %v138
    %v140 = vrot.slane %v139, 2
    %v141 = vadd.f32 %v139, %v140
    %v142 = vrot.slane %v141, 1
    %v143 = vadd.f32 %v141, %v142
    %v144 = vsel %vm81, %v123, 0.0
    %v145 = vrot.slane %v144, 4
    %v146 = vadd.f32 %v144, %v145
    %v147 = vrot.slane %v146, 2
    %v148 = vadd.f32 %v146, %v147
    %v149 = vrot.slane %v148, 1
    %v150 = vadd.f32 %v148, %v149
    %v151 = vsel %vm81, %v127, 0.0
    %v152 = vrot.slane %v151, 4
    %v153 = vadd.f32 %v151, %v152
    %v154 = vrot.slane %v153, 2
    %v155 = vadd.f32 %v153, %v154
    %v156 = vrot.slane %v155, 1
    %v157 = vadd.f32 %v155, %v156
    %v158 = vrcp.pop %v136
    %v159 = vmul.f32 1.0, %v158
    %v160 = vrcp.pop %v143
    %v161 = vmul.f32 1.0, %v160
    %v162 = vrcp.pop %v150
    %v163 = vmul.f32 1.0, %v162
    %v164 = vrcp.pop %v157
    %v165 = vmul.f32 1.0, %v164
    %v166 = vlog2.pop %v136
    %v167 = vmul.f32 %v166, 0.6931472
    %v168 = vlog2.pop %v143
    %v169 = vmul.f32 %v168, 0.6931472
    %v170 = vlog2.pop %v150
    %v171 = vmul.f32 %v170, 0.6931472
    %v172 = vlog2.pop %v157
    %v173 = vmul.f32 %v172, 0.6931472
    %v176 = vcombine.high %v73, %v73
    %v177 = vcombine.high %v74, %v74
    %v180 = vsel %vm81, %v73, 0.0
    %v181 = vrot.slane %v180, 4
    %v182 = vadd.f32 %v180, %v181
    %v183 = vrot.slane %v182, 2
    %v184 = vadd.f32 %v182, %v183
    %v185 = vrot.slane %v184, 1
    %v186 = vadd.f32 %v184, %v185
    %v187 = vsel %vm81, %v176, 0.0
    %v188 = vrot.slane %v187, 4
    %v189 = vadd.f32 %v187, %v188
    %v190 = vrot.slane %v189, 2
    %v191 = vadd.f32 %v189, %v190
    %v192 = vrot.slane %v191, 1
    %v193 = vadd.f32 %v191, %v192
    %v194 = vsel %vm81, %v74, 0.0
    %v195 = vrot.slane %v194, 4
    %v196 = vadd.f32 %v194, %v195
    %v197 = vrot.slane %v196, 2
    %v198 = vadd.f32 %v196, %v197
    %v199 = vrot.slane %v198, 1
    %v200 = vadd.f32 %v198, %v199
    %v201 = vsel %vm81, %v177, 0.0
    %v202 = vrot.slane %v201, 4
    %v203 = vadd.f32 %v201, %v202
    %v204 = vrot.slane %v203, 2
    %v205 = vadd.f32 %v203, %v204
    %v206 = vrot.slane %v205, 1
    %v207 = vadd.f32 %v205, %v206
    %v208 = vmul.f32 %v73, %v118
    %v209 = vmul.f32 %v74, %v119
    %v212 = vcombine.high %v208, %v208
    %v213 = vcombine.high %v209, %v209
    %v216 = vsel %vm81, %v208, 0.0
    %v217 = vrot.slane %v216, 4
    %v218 = vadd.f32 %v216, %v217
    %v219 = vrot.slane %v218, 2
    %v220 = vadd.f32 %v218, %v219
    %v221 = vrot.slane %v220, 1
    %v222 = vadd.f32 %v220, %v221
    %v223 = vsel %vm81, %v212, 0.0
    %v224 = vrot.slane %v223, 4
    %v225 = vadd.f32 %v223, %v224
    %v226 = vrot.slane %v225, 2
    %v227 = vadd.f32 %v225, %v226
    %v228 = vrot.slane %v227, 1
    %v229 = vadd.f32 %v227, %v228
    %v230 = vsel %vm81, %v209, 0.0
    %v231 = vrot.slane %v230, 4
    %v232 = vadd.f32 %v230, %v231
    %v233 = vrot.slane %v232, 2
    %v234 = vadd.f32 %v232, %v233
    %v235 = vrot.slane %v234, 1
    %v236 = vadd.f32 %v234, %v235
    %v237 = vsel %vm81, %v213, 0.0
    %v238 = vrot.slane %v237, 4
    %v239 = vadd.f32 %v237, %v238
    %v240 = vrot.slane %v239, 2
    %v241 = vadd.f32 %v239, %v240
    %v242 = vrot.slane %v241, 1
    %v243 = vadd.f32 %v241, %v242
    %v244 = vld [vmem:[#allocation2] sm:$0x3]
    %v245 = vld [vmem:[#allocation2 + $0x2] sm:$0x3]
    %v246 = vmul.f32 %v167, %v186
    %v247 = vmul.f32 %v169, %v193
    %v248 = vmul.f32 %v171, %v200
    %v249 = vmul.f32 %v173, %v207
    %v250 = vsub.f32 %v246, %v222
    %v251 = vsub.f32 %v247, %v229
    %v252 = vsub.f32 %v248, %v236
    %v253 = vsub.f32 %v249, %v243
    %v258 = vcombine.low %v250, %v251
    %v260 = vunpack.c.l.s4 1966171168
    %v261 = vunpack.c.0.s8 %v260
    %v262 = vlaneseq
    %v263 = vshrl.u32 %v262, 7
    %v264 = vsub.s32 %v261, %v263
    %v265 = vrot.slane %v258, %v264
    %v267 = vunpack.c.l.s4 1966171168
    %v268 = vunpack.c.0.s8 %v267
    %v269 = vlaneseq
    %v270 = vshrl.u32 %v269, 7
    %v271 = vsub.s32 %v268, %v270
    %v272 = vrot.slane %v265, %v271
    %v273 = vcombine.low %v252, %v253
    %v275 = vunpack.c.l.s4 1966171168
    %v276 = vunpack.c.0.s8 %v275
    %v277 = vlaneseq
    %v278 = vshrl.u32 %v277, 7
    %v279 = vsub.s32 %v276, %v278
    %v280 = vrot.slane %v273, %v279
    %v282 = vunpack.c.l.s4 1966171168
    %v283 = vunpack.c.0.s8 %v282
    %v284 = vlaneseq
    %v285 = vshrl.u32 %v284, 7
    %v286 = vsub.s32 %v283, %v285
    %v287 = vrot.slane %v280, %v286
    %v290 = vadd.f32 %v244, %v272
    %v291 = vadd.f32 %v245, %v287
    %v292 = vlaneseq
    %vm293 = vcmp.ge.s32.totalorder %v292, 0
    %vm294 = vcmp.lt.s32.totalorder %v292, 256
    %vm295 = vmand %vm293, %vm294
    %296 = vst.msk [vmem:[#allocation2] sm:$0x3] %vm295, %v290
    %297 = vst.msk [vmem:[#allocation2 + $0x2] sm:$0x3] %vm295, %v291
    %v302 = vcombine.low %v159, %v161
    %v303 = vcombine.low %v163, %v165
    %v306 = vmul.f32 %v121, %v302
    %v307 = vmul.f32 %v123, %v303
    %v308 = vld [vmem:[#allocation8] sm:$0x3]
    %v309 = vmul.f32 %v306, %v73
    %v310 = vmul.f32 %v307, %v74
    %v313 = vcombine.high %v309, %v309
    %v314 = vcombine.high %v310, %v310
    %v317 = vsel %vm81, %v309, 0.0
    %v318 = vsel %vm81, %v313, 0.0
    %v319 = vadd.f32 %v317, %v318
    %320 = vadd.xlane.f32.xlu0 %v319
    %v321 = vpop.xlane.xlu0 %320
    %v322 = vsel %vm81, %v310, 0.0
    %v323 = vsel %vm81, %v314, 0.0
    %v324 = vadd.f32 %v322, %v323
    %325 = vadd.xlane.f32.xlu0 %v324
    %v326 = vpop.xlane.xlu0 %325
    %v329 = vlaneseq
    %v330 = vand.u32 %v329, 127
    %v331 = vlaneseq
    %v332 = vshrl.u32 %v331, 7
    %v333 = vsub.s32 %v330, %v332
    %v334 = vrot.slane %v321, %v333
    %v335 = vlaneseq
    %v336 = vshrl.u32 %v335, 7
    %v337 = vsub.s32 %v330, %v336
    %v338 = vrot.slane %v326, %v337
    %vm339 = vcmask 1041409
    %v340 = vsel %vm339, %v338, %v334
    %v342 = vadd.f32 %v308, %v340
    %vm343 = vcmask 25600
    %344 = vst.msk [vmem:[#allocation8] sm:$0x3] %vm343, %v342
    %v345 = vld [vmem:[#allocation9] sm:$0x3]
    %v346 = vadd.f32 %v306, %v73
    %v347 = vadd.f32 %v307, %v74
    %v350 = vcombine.high %v346, %v346
    %v351 = vcombine.high %v347, %v347
    %v354 = vsel %vm81, %v346, 0.0
    %v355 = vsel %vm81, %v350, 0.0
    %v356 = vadd.f32 %v354, %v355
    %357 = vadd.xlane.f32.xlu0 %v356
    %v358 = vpop.xlane.xlu0 %357
    %v359 = vsel %vm81, %v347, 0.0
    %v360 = vsel %vm81, %v351, 0.0
    %v361 = vadd.f32 %v359, %v360
    %362 = vadd.xlane.f32.xlu0 %v361
    %v363 = vpop.xlane.xlu0 %362
    %v366 = vlaneseq
    %v367 = vshrl.u32 %v366, 7
    %v368 = vsub.s32 %v330, %v367
    %v369 = vrot.slane %v358, %v368
    %v370 = vlaneseq
    %v371 = vshrl.u32 %v370, 7
    %v372 = vsub.s32 %v330, %v371
    %v373 = vrot.slane %v363, %v372
    %v374 = vsel %vm339, %v373, %v369
    %v376 = vadd.f32 %v345, %v374
    %377 = vst.msk [vmem:[#allocation9] sm:$0x3] %vm343, %v376
    // Predicated region
    $region22: #{tpu_custom_call.1} parent=1 // pred_check
      %p378 = pneg %p56
    $region23: #{tpu_custom_call.1} parent=1 // pred_check_branch
      %380 = sbr.rel (%p378) target = $region25
    $region24: #{tpu_custom_call.1} parent=1 // pred_region
      %v381 = vld [vmem:[#allocation2] sm:$0x3]
      %v382 = vld [vmem:[#allocation2 + $0x2] sm:$0x3]
      %v385 = vlaneseq
      %v386 = vshrl.u32 %v385, 7
      %v387 = vsub.s32 0, %v386
      %v388 = vrot.slane %v381, %v387
      %v389 = vlaneseq
      %v390 = vshrl.u32 %v389, 7
      %v391 = vsub.s32 1, %v390
      %v392 = vrot.slane %v381, %v391
      %v393 = vlaneseq
      %v394 = vshrl.u32 %v393, 7
      %v395 = vsub.s32 0, %v394
      %v396 = vrot.slane %v382, %v395
      %v397 = vlaneseq
      %v398 = vshrl.u32 %v397, 7
      %v399 = vsub.s32 1, %v398
      %v400 = vrot.slane %v382, %v399
      %vm405 = vcmask 1040384
      %v406 = vsel %vm405, %v388, 0.0
      %v407 = vsel %vm405, %v392, 0.0
      %v408 = vadd.f32 %v406, %v407
      %v409 = vsel %vm405, %v396, 0.0
      %v410 = vadd.f32 %v408, %v409
      %v411 = vsel %vm405, %v400, 0.0
      %v412 = vadd.f32 %v410, %v411
      %413 = vadd.xlane.f32.xlu0 %v412
      %v414 = vpop.xlane.xlu0 %413
      %v415 = vrot.slane %v414, 4
      %v416 = vadd.f32 %v414, %v415
      %v417 = vrot.slane %v416, 2
      %v418 = vadd.f32 %v416, %v417
      %v419 = vrot.slane %v418, 1
      %v420 = vadd.f32 %v418, %v419
      %s421 = vtos %v420
      %v422 = vstv %s421
      %vm423 = vcmask 0
      %424 = vst.msk [vmem:[#allocation11] sm:$0x1] %vm423, %v422
    $region25: #{tpu_custom_call.1} parent=1 // pred_fallthru
      _
    // Predicated region
    $region26: #{tpu_custom_call.1} parent=1 // pred_check
      _
    $region27: #{tpu_custom_call.1} parent=1 // pred_check_branch
      %426 = sbr.rel (0) target = $region29
    $region28: #{tpu_custom_call.1} parent=1 // pred_region
      %s428 = ssub.s32 32, 32
      %429 = vsyncadd [#allocation5], %s428
      %s431 = sshll.u32 [#allocation8], 4
      %s432 = int_to_ptr.vmem [resolvable:$true] %s431
      %434 = dma.vmem_to_hbm [thread:$0]  %s432, 32, %s2, [#allocation5]
    $region29: #{tpu_custom_call.1} parent=1 // pred_fallthru
      _
    // Predicated region
    $region30: #{tpu_custom_call.1} parent=1 // pred_check
      _
    $region31: #{tpu_custom_call.1} parent=1 // pred_check_branch
      %436 = sbr.rel (0) target = $region33
    $region32: #{tpu_custom_call.1} parent=1 // pred_region
      %s438 = ssub.s32 32, 32
      %439 = vsyncadd [#allocation10], %s438
      %s441 = sshll.u32 [#allocation9], 4
      %s442 = int_to_ptr.vmem [resolvable:$true] %s441
      %444 = dma.vmem_to_hbm [thread:$0]  %s442, 32, %s3, [#allocation10]
    $region33: #{tpu_custom_call.1} parent=1 // pred_fallthru
      _
    // Predicated region
    $region34: #{tpu_custom_call.1} parent=1 // pred_check
      _
    $region35: #{tpu_custom_call.1} parent=1 // pred_check_branch
      %446 = sbr.rel (0) target = $region37
    $region36: #{tpu_custom_call.1} parent=1 // pred_region
      %s448 = ssub.s32 16, 16
      %449 = vsyncadd [#allocation10], %s448
      %s451 = sshll.u32 [#allocation11], 4
      %s452 = int_to_ptr.vmem [resolvable:$true] %s451
      %454 = dma.vmem_to_hbm [thread:$0]  %s452, 16, %s4, [#allocation10]
    $region37: #{tpu_custom_call.1} parent=1 // pred_fallthru
      _
    // Predicated region
    $region38: #{tpu_custom_call.1} parent=1 // pred_check
      _
    $region39: #{tpu_custom_call.1} parent=1 // pred_check_branch
      %456 = sbr.rel (0) target = $region41
    $region40: #{tpu_custom_call.1} parent=1 // pred_region
      %457 = dma.done [#allocation5], 32
    $region41: #{tpu_custom_call.1} parent=1 // pred_fallthru
      _
    // Predicated region
    $region42: #{tpu_custom_call.1} parent=1 // pred_check
      _
    $region43: #{tpu_custom_call.1} parent=1 // pred_check_branch
      %459 = sbr.rel (0) target = $region45
    $region44: #{tpu_custom_call.1} parent=1 // pred_region
      %460 = dma.done [#allocation10], 32
    $region45: #{tpu_custom_call.1} parent=1 // pred_fallthru
      _
    // Predicated region
    $region46: #{tpu_custom_call.1} parent=1 // pred_check
      _
    $region47: #{tpu_custom_call.1} parent=1 // pred_check_branch
      %462 = sbr.rel (0) target = $region49
    $region48: #{tpu_custom_call.1} parent=1 // pred_region
      %463 = dma.done [#allocation10], 16
    $region49: #{tpu_custom_call.1} parent=1 // pred_fallthru
      _
    %464 = vsyncpa [#allocation4], 1
    %465 = vsyncpa [#allocation7], 1
    %466 = vsyncpa [#allocation5], 1
    %467 = vsyncpa [#allocation10], 1

</llo_original>
